<compile_context>
chip_gen: v7x
topology: tpu7x:2x2x1
jax: 0.10.0
libtpu: 0.0.40
codegen_flags: <defaults>
</compile_context>

<pallas_src>
import functools

import jax
import jax.numpy as jnp
from jax.experimental import pallas as pl
from jax.experimental.pallas import tpu as pltpu

_SUBLANE = 8


def _round_up(n, m):
    return (n + m - 1) // m * m


def _cdiv(a, b):
    return -(-a // b)


def _vmem_capacity_bytes():
    """Physical VMEM per TensorCore; assume the smallest (v7x, 64 MiB) if unknown."""
    try:
        return int(pltpu.get_tpu_info().vmem_capacity_bytes)
    except Exception:
        return 64 << 20


def _resident_spec(shape, single_buffer):
    """Constant-index BlockSpec: block == whole array, resident across grid steps.

    For large weights request a single VMEM buffer (double-buffering a block whose
    index never changes is pure memory waste — matters on v7x's 64 MiB VMEM).
    Falls back to the default spec if pipeline_mode/Buffered is unavailable.
    """
    index_map = lambda i: (0,) * len(shape)
    if single_buffer:
        try:
            return pl.BlockSpec(shape, index_map, pipeline_mode=pl.Buffered(1))
        except (TypeError, AttributeError):
            pass
    return pl.BlockSpec(shape, index_map)


def _mlp_kernel(n_linear, has_mask, *refs):
    """refs = (x, [mask], w0, b0, ..., w_{n-1}, b_{n-1}, out).

    x/out are (TM, feat) row tiles; weights/biases are full (unpadded) arrays
    resident in VMEM across all grid steps. Matmuls run in the compute dtype
    (f32 or bf16) with f32 accumulation; bias, GELU and mask stay in f32.
    """
    idx = 0
    x_ref = refs[idx]
    idx += 1
    m_ref = None
    if has_mask:
        m_ref = refs[idx]
        idx += 1
    out_ref = refs[-1]
    wb_refs = refs[idx:-1]

    compute_dtype = x_ref.dtype
    h = x_ref[...]                                          # native dtype -> MXU
    for i in range(n_linear):
        w = wb_refs[2 * i][...]                             # (fan_in, fan_out)
        b = wb_refs[2 * i + 1][...]                         # (1, fan_out) f32
        acc = jnp.dot(h, w, preferred_element_type=jnp.float32) + b
        if i < n_linear - 1:                                # hidden layers only
            acc = jax.nn.gelu(acc, approximate=True)        # f32 elementwise (EUP tanh)
            h = acc.astype(compute_dtype)                   # back to MXU dtype
        else:
            h = acc                                         # keep head output f32
    if has_mask:
        h = h * m_ref[...]                                  # f32 mask, lane broadcast
    out_ref[...] = h.astype(out_ref.dtype)


def mlp_forward(x, mask, weights, biases, *, compute_dtype=None, tm=2048):
    """x: (B, S, in_features); mask: (B, S) or None.
    weights[i]: (fan_in_i, fan_out_i), biases[i]: (fan_out_i,).
    compute_dtype: optional matmul dtype (e.g. jnp.bfloat16); accumulation is f32,
    output keeps x.dtype."""
    B, S, f_in = x.shape
    rows = B * S
    n_linear = len(weights)
    f_out = weights[-1].shape[1]
    out_dtype = x.dtype
    cdt = jnp.dtype(compute_dtype) if compute_dtype is not None else jnp.dtype(x.dtype)
    c_size = cdt.itemsize
    o_size = jnp.dtype(out_dtype).itemsize
    has_mask = mask is not None

    dims = [f_in] + [w.shape[1] for w in weights]           # [f_in, h, ..., f_out]
    max_dim = max(dims)

    # ---- cast operands (bf16 path halves HBM traffic; f32 path is a no-op) ----
    x2 = x.reshape(rows, f_in).astype(cdt)
    w_args = [w.astype(cdt) for w in weights]
    b_args = [b.astype(jnp.float32).reshape(1, -1) for b in biases]

    w_bytes_1x = sum(w.size * c_size + b.size * 4 for w, b in zip(w_args, b_args))
    single_buffer_weights = 2 * w_bytes_1x > (8 << 20)      # only worth it when big
    w_bytes_resident = w_bytes_1x if single_buffer_weights else 2 * w_bytes_1x

    # ---- per-generation VMEM budget (v5e/v6e: 128 MiB physical; v7x: 64 MiB) ----
    cap = _vmem_capacity_bytes()
    if cap >= (100 << 20):
        budget, limit_cap = 64 << 20, 96 << 20
    else:
        budget, limit_cap = 28 << 20, 40 << 20

    # ---- choose row tile TM from the VMEM budget ----
    per_row = (2 * f_in * c_size                            # x tile (double-buffered)
               + 2 * f_out * o_size                         # out tile (double-buffered)
               + (2 * 4 if has_mask else 0)                 # mask tile
               + 4 * max_dim * 4)                           # f32 intermediates (conservative)
    tm_fit = max(_SUBLANE,
                 int((budget - w_bytes_resident) // max(per_row, 1))
                 // _SUBLANE * _SUBLANE)

    rows8 = _round_up(rows, _SUBLANE)
    TM = max(_SUBLANE, min(tm, tm_fit, rows8))
    # Keep the "parallel" row axis multi-step so both v7x TensorCores get work
    # (>= 8 steps when rows are plentiful, else >= 2). No effect on v5e/v6e.
    min_steps = 8 if rows8 >= 8 * 512 else (2 if rows8 >= 2 * _SUBLANE else 1)
    TM = min(TM, max(_SUBLANE, _round_up(_cdiv(rows8, min_steps), _SUBLANE)))

    rows_p = _round_up(rows, TM)
    grid = (rows_p // TM,)

    # Only the ROW axis is (conditionally) padded; feature dims stay unpadded.
    if rows_p != rows:
        x2 = jnp.pad(x2, ((0, rows_p - rows), (0, 0)))

    args = [x2]
    in_specs = [pl.BlockSpec((TM, f_in), lambda i: (i, 0))]
    if has_mask:
        m2 = mask.reshape(rows, 1).astype(jnp.float32)      # mask stays f32
        if rows_p != rows:
            m2 = jnp.pad(m2, ((0, rows_p - rows), (0, 0)))
        args.append(m2)
        in_specs.append(pl.BlockSpec((TM, 1), lambda i: (i, 0)))
    for w, b in zip(w_args, b_args):
        args.extend([w, b])
        in_specs.append(_resident_spec(w.shape, single_buffer_weights))
        in_specs.append(_resident_spec(b.shape, single_buffer_weights))

    vmem_limit = int(min(max(w_bytes_resident + TM * per_row + (8 << 20), 16 << 20),
                         limit_cap))

    # Advisory cost estimate so XLA can overlap the pallas_call with neighbors.
    flops = 2 * rows * sum(w.shape[0] * w.shape[1] for w in weights)
    transcend = rows * sum(w.shape[1] for w in weights[:-1])    # tanh in GELU
    bytes_accessed = (x2.size * c_size + w_bytes_1x
                      + (rows_p * 4 if has_mask else 0)
                      + rows_p * f_out * o_size)

    out2 = pl.pallas_call(
        functools.partial(_mlp_kernel, n_linear, has_mask),
        out_shape=jax.ShapeDtypeStruct((rows_p, f_out), out_dtype),
        grid=grid,
        in_specs=in_specs,
        out_specs=pl.BlockSpec((TM, f_out), lambda i: (i, 0)),
        compiler_params=pltpu.CompilerParams(
            dimension_semantics=("parallel",),          # megacore row sharding on v7x
            vmem_limit_bytes=vmem_limit,
        ),
        cost_estimate=pl.CostEstimate(
            flops=int(flops),
            transcendentals=int(transcend),
            bytes_accessed=int(bytes_accessed),
        ),
    )(*args)

    if rows_p != rows:
        out2 = out2[:rows]
    return out2.reshape(B, S, f_out)


def init_mlp_params(key, in_features, out_features, hidden_features, hidden_layers):
    """PyTorch-style Linear init: U(-1/sqrt(fan_in), 1/sqrt(fan_in)).
    Weights stored transposed as (fan_in, fan_out)."""
    dims = []
    for i in range(hidden_layers):
        fan_in = in_features if i == 0 else hidden_features
        dims.append((fan_in, hidden_features))
    dims.append((hidden_features, out_features))

    weights, biases = [], []
    for (fan_in, fan_out) in dims:
        key, kw, kb = jax.random.split(key, 3)
        bound = 1.0 / jnp.sqrt(jnp.float32(fan_in))
        weights.append(
            jax.random.uniform(kw, (fan_in, fan_out), jnp.float32, -bound, bound)
        )
        biases.append(
            jax.random.uniform(kb, (fan_out,), jnp.float32, -bound, bound)
        )
    return weights, biases


def _ref_forward(x, mask, weights, biases):
    h = x
    for i, (w, b) in enumerate(zip(weights, biases)):
        h = h @ w + b
        if i < len(weights) - 1:
            h = jax.nn.gelu(h, approximate=True)
    if mask is not None:
        h = h * mask[..., None]
    return h


if __name__ == "__main__":
    # Module config: MLP(in=16, out=16, hidden=32, hidden_layers=2,
    #                   activation=GELU(tanh), dropout_p=0.0)
    B, S = 2, 8
    in_features, hidden_features, out_features, hidden_layers = 16, 32, 16, 2

    key = jax.random.PRNGKey(0)
    key, kx, km = jax.random.split(key, 3)
    x = jax.random.normal(kx, (B, S, in_features), dtype=jnp.float32)
    mask = (jax.random.uniform(km, (B, S)) > 0.5).astype(jnp.float32)

    weights, biases = init_mlp_params(
        key, in_features, out_features, hidden_features, hidden_layers
    )

    ref = _ref_forward(x, mask, weights, biases)
    ref_nm = _ref_forward(x, None, weights, biases)

    # f32 path with mask (grid has 2 row steps -> exercises pipelining)
    out = jax.block_until_ready(mlp_forward(x, mask, weights, biases))
    assert out.shape == (B, S, out_features)
    assert jnp.allclose(out, ref, atol=1e-5, rtol=1e-5)

    # f32 path without mask (no-mask kernel variant)
    out_nm = jax.block_until_ready(mlp_forward(x, None, weights, biases))
    assert jnp.allclose(out_nm, ref_nm, atol=1e-5, rtol=1e-5)

    # bf16 compute path (halved HBM traffic / bf16 MXU); f32 accumulation.
    out_bf = jax.block_until_ready(
        mlp_forward(x, mask, weights, biases, compute_dtype=jnp.bfloat16)
    )
    assert out_bf.dtype == x.dtype
    assert jnp.allclose(out_bf, ref, atol=5e-2, rtol=5e-2)

    print("KERNEL_OK")
</pallas_src>

<mosaic_0001>
module attributes {stable_mosaic.version = 11 : i64} {
  func.func @_mlp_kernel(%arg0: i32, %arg1: memref<8x16xf32, #tpu.memory_space<vmem>>, %arg2: memref<8x1xf32, #tpu.memory_space<vmem>>, %arg3: memref<16x32xf32, #tpu.memory_space<vmem>>, %arg4: memref<1x32xf32, #tpu.memory_space<vmem>>, %arg5: memref<32x32xf32, #tpu.memory_space<vmem>>, %arg6: memref<1x32xf32, #tpu.memory_space<vmem>>, %arg7: memref<32x16xf32, #tpu.memory_space<vmem>>, %arg8: memref<1x16xf32, #tpu.memory_space<vmem>>, %arg9: memref<8x16xf32, #tpu.memory_space<vmem>>) attributes {dimension_semantics = [#tpu.dimension_semantics<parallel>], iteration_bounds = array<i64: 2>, scalar_prefetch = 0 : i64, scratch_operands = 0 : i64, tpu.core_type = #tpu.core_type<tc>, window_params = [{transform_indices = @transform_0, window_bounds = array<i64: 8, 16>}, {transform_indices = @transform_1, window_bounds = array<i64: 8, 1>}, {pipeline_mode = #tpu.pipeline_mode<synchronous>, transform_indices = @transform_2, window_bounds = array<i64: 16, 32>}, {pipeline_mode = #tpu.pipeline_mode<synchronous>, transform_indices = @transform_3, window_bounds = array<i64: 1, 32>}, {pipeline_mode = #tpu.pipeline_mode<synchronous>, transform_indices = @transform_4, window_bounds = array<i64: 32, 32>}, {pipeline_mode = #tpu.pipeline_mode<synchronous>, transform_indices = @transform_5, window_bounds = array<i64: 1, 32>}, {pipeline_mode = #tpu.pipeline_mode<synchronous>, transform_indices = @transform_6, window_bounds = array<i64: 32, 16>}, {pipeline_mode = #tpu.pipeline_mode<synchronous>, transform_indices = @transform_7, window_bounds = array<i64: 1, 16>}, {transform_indices = @transform_8, window_bounds = array<i64: 8, 16>}]} {
    %c0 = arith.constant 0 : index
    %c0_0 = arith.constant 0 : index
    %0 = vector.load %arg1[%c0, %c0_0] : memref<8x16xf32, #tpu.memory_space<vmem>>, vector<8x16xf32>
    %c0_1 = arith.constant 0 : index
    %c0_2 = arith.constant 0 : index
    %1 = vector.load %arg3[%c0_1, %c0_2] : memref<16x32xf32, #tpu.memory_space<vmem>>, vector<16x32xf32>
    %c0_3 = arith.constant 0 : index
    %c0_4 = arith.constant 0 : index
    %2 = vector.load %arg4[%c0_3, %c0_4] : memref<1x32xf32, #tpu.memory_space<vmem>>, vector<1x32xf32>
    %cst = arith.constant dense<0.000000e+00> : vector<8x32xf32>
    %3 = tpu.matmul %0, %1, %cst {dimension_numbers = #tpu.dot_dimension_numbers<[1], [0], [0], [1], [0, 0, 1, 1], [], []>} : vector<8x16xf32>, vector<16x32xf32>, vector<8x32xf32> -> vector<8x32xf32>
    %4 = vector.broadcast %2 : vector<1x32xf32> to vector<8x32xf32>
    %5 = arith.addf %3, %4 : vector<8x32xf32>
    %6 = arith.mulf %5, %5 : vector<8x32xf32>
    %7 = arith.mulf %5, %6 : vector<8x32xf32>
    %cst_5 = arith.constant 4.471500e-02 : f32
    %8 = vector.broadcast %cst_5 : f32 to vector<8x32xf32>
    %9 = arith.mulf %8, %7 : vector<8x32xf32>
    %10 = arith.addf %5, %9 : vector<8x32xf32>
    %cst_6 = arith.constant 0.797884583 : f32
    %11 = vector.broadcast %cst_6 : f32 to vector<8x32xf32>
    %12 = arith.mulf %11, %10 : vector<8x32xf32>
    %13 = math.tanh %12 : vector<8x32xf32>
    %cst_7 = arith.constant 1.000000e+00 : f32
    %14 = vector.broadcast %cst_7 : f32 to vector<8x32xf32>
    %15 = arith.addf %14, %13 : vector<8x32xf32>
    %cst_8 = arith.constant 5.000000e-01 : f32
    %16 = vector.broadcast %cst_8 : f32 to vector<8x32xf32>
    %17 = arith.mulf %16, %15 : vector<8x32xf32>
    %18 = arith.mulf %5, %17 : vector<8x32xf32>
    %c0_9 = arith.constant 0 : index
    %c0_10 = arith.constant 0 : index
    %19 = vector.load %arg5[%c0_9, %c0_10] : memref<32x32xf32, #tpu.memory_space<vmem>>, vector<32x32xf32>
    %c0_11 = arith.constant 0 : index
    %c0_12 = arith.constant 0 : index
    %20 = vector.load %arg6[%c0_11, %c0_12] : memref<1x32xf32, #tpu.memory_space<vmem>>, vector<1x32xf32>
    %cst_13 = arith.constant dense<0.000000e+00> : vector<8x32xf32>
    %21 = tpu.matmul %18, %19, %cst_13 {dimension_numbers = #tpu.dot_dimension_numbers<[1], [0], [0], [1], [0, 0, 1, 1], [], []>} : vector<8x32xf32>, vector<32x32xf32>, vector<8x32xf32> -> vector<8x32xf32>
    %22 = vector.broadcast %20 : vector<1x32xf32> to vector<8x32xf32>
    %23 = arith.addf %21, %22 : vector<8x32xf32>
    %24 = arith.mulf %23, %23 : vector<8x32xf32>
    %25 = arith.mulf %23, %24 : vector<8x32xf32>
    %cst_14 = arith.constant 4.471500e-02 : f32
    %26 = vector.broadcast %cst_14 : f32 to vector<8x32xf32>
    %27 = arith.mulf %26, %25 : vector<8x32xf32>
    %28 = arith.addf %23, %27 : vector<8x32xf32>
    %cst_15 = arith.constant 0.797884583 : f32
    %29 = vector.broadcast %cst_15 : f32 to vector<8x32xf32>
    %30 = arith.mulf %29, %28 : vector<8x32xf32>
    %31 = math.tanh %30 : vector<8x32xf32>
    %cst_16 = arith.constant 1.000000e+00 : f32
    %32 = vector.broadcast %cst_16 : f32 to vector<8x32xf32>
    %33 = arith.addf %32, %31 : vector<8x32xf32>
    %cst_17 = arith.constant 5.000000e-01 : f32
    %34 = vector.broadcast %cst_17 : f32 to vector<8x32xf32>
    %35 = arith.mulf %34, %33 : vector<8x32xf32>
    %36 = arith.mulf %23, %35 : vector<8x32xf32>
    %c0_18 = arith.constant 0 : index
    %c0_19 = arith.constant 0 : index
    %37 = vector.load %arg7[%c0_18, %c0_19] : memref<32x16xf32, #tpu.memory_space<vmem>>, vector<32x16xf32>
    %c0_20 = arith.constant 0 : index
    %c0_21 = arith.constant 0 : index
    %38 = vector.load %arg8[%c0_20, %c0_21] : memref<1x16xf32, #tpu.memory_space<vmem>>, vector<1x16xf32>
    %cst_22 = arith.constant dense<0.000000e+00> : vector<8x16xf32>
    %39 = tpu.matmul %36, %37, %cst_22 {dimension_numbers = #tpu.dot_dimension_numbers<[1], [0], [0], [1], [0, 0, 1, 1], [], []>} : vector<8x32xf32>, vector<32x16xf32>, vector<8x16xf32> -> vector<8x16xf32>
    %40 = vector.broadcast %38 : vector<1x16xf32> to vector<8x16xf32>
    %41 = arith.addf %39, %40 : vector<8x16xf32>
    %c0_23 = arith.constant 0 : index
    %c0_24 = arith.constant 0 : index
    %42 = vector.load %arg2[%c0_23, %c0_24] : memref<8x1xf32, #tpu.memory_space<vmem>>, vector<8x1xf32>
    %43 = vector.broadcast %42 : vector<8x1xf32> to vector<8x16xf32>
    %44 = arith.mulf %41, %43 : vector<8x16xf32>
    %c0_25 = arith.constant 0 : index
    %c0_26 = arith.constant 0 : index
    %45 = vector.load %arg9[%c0_25, %c0_26] : memref<8x16xf32, #tpu.memory_space<vmem>>, vector<8x16xf32>
    tpu.vector_store %arg9[%c0_25, %c0_26], %44 {strides = array<i32>} : memref<8x16xf32, #tpu.memory_space<vmem>>, vector<8x16xf32>,
    return
  }
  func.func @transform_0(%arg0: i32) -> (i32, i32) {
    %c0_i32 = arith.constant 0 : i32
    %c0_i32_0 = arith.constant 0 : i32
    return %arg0, %c0_i32 : i32, i32
  }
  func.func @transform_1(%arg0: i32) -> (i32, i32) {
    %c0_i32 = arith.constant 0 : i32
    %c0_i32_0 = arith.constant 0 : i32
    return %arg0, %c0_i32 : i32, i32
  }
  func.func @transform_2(%arg0: i32) -> (i32, i32) {
    %c0_i32 = arith.constant 0 : i32
    %c0_i32_0 = arith.constant 0 : i32
    %c0_i32_1 = arith.constant 0 : i32
    return %c0_i32, %c0_i32_0 : i32, i32
  }
  func.func @transform_3(%arg0: i32) -> (i32, i32) {
    %c0_i32 = arith.constant 0 : i32
    %c0_i32_0 = arith.constant 0 : i32
    %c0_i32_1 = arith.constant 0 : i32
    return %c0_i32, %c0_i32_0 : i32, i32
  }
  func.func @transform_4(%arg0: i32) -> (i32, i32) {
    %c0_i32 = arith.constant 0 : i32
    %c0_i32_0 = arith.constant 0 : i32
    %c0_i32_1 = arith.constant 0 : i32
    return %c0_i32, %c0_i32_0 : i32, i32
  }
  func.func @transform_5(%arg0: i32) -> (i32, i32) {
    %c0_i32 = arith.constant 0 : i32
    %c0_i32_0 = arith.constant 0 : i32
    %c0_i32_1 = arith.constant 0 : i32
    return %c0_i32, %c0_i32_0 : i32, i32
  }
  func.func @transform_6(%arg0: i32) -> (i32, i32) {
    %c0_i32 = arith.constant 0 : i32
    %c0_i32_0 = arith.constant 0 : i32
    %c0_i32_1 = arith.constant 0 : i32
    return %c0_i32, %c0_i32_0 : i32, i32
  }
  func.func @transform_7(%arg0: i32) -> (i32, i32) {
    %c0_i32 = arith.constant 0 : i32
    %c0_i32_0 = arith.constant 0 : i32
    %c0_i32_1 = arith.constant 0 : i32
    return %c0_i32, %c0_i32_0 : i32, i32
  }
  func.func @transform_8(%arg0: i32) -> (i32, i32) {
    %c0_i32 = arith.constant 0 : i32
    %c0_i32_0 = arith.constant 0 : i32
    return %arg0, %c0_i32 : i32, i32
  }
}

</mosaic_0001>

<llo_original>
// kernel: tpu_custom_call.1
$region0: #{tpu_custom_call.1}
  #allocation0 [shape = 'u32[]', space=smem, size = 0x4, offset = 0x4, fixed_abs, tag = 'smem constant byte address 0x4 - core index']
  #allocation1 [shape = 'u32[144,128]{1,0:T(1,128)}', space=vmem, size = 0x12000, scoped, tag = 'internal scratch']
  %s0 = inlined_call_operand.vmem [shape: f32[16,16], index: 0, kind: input, shape index: {}]
  %s1 = inlined_call_operand.vmem [shape: f32[16,1], index: 1, kind: input, shape index: {}]
  %s2 = inlined_call_operand.vmem [shape: f32[16,32], index: 2, kind: input, shape index: {}]
  %s3 = inlined_call_operand.hbm [shape: f32[1,32], index: 3, kind: input, shape index: {}]
  %s4 = inlined_call_operand.vmem [shape: f32[32,32], index: 4, kind: input, shape index: {}]
  %s5 = inlined_call_operand.vmem [shape: f32[1,32], index: 5, kind: input, shape index: {}]
  %s6 = inlined_call_operand.vmem [shape: f32[32,16], index: 6, kind: input, shape index: {}]
  %s7 = inlined_call_operand.vmem [shape: f32[1,16], index: 7, kind: input, shape index: {}]
  %s8 = inlined_call_operand.hbm [shape: f32[16,16], index: 8, kind: output, shape index: {}]
  %s9 = sld [smem:[#allocation0]]
  $region69: #{tpu_custom_call.1} parent=0
    _
  %s11 = ssub.s32 1, %s9
  %s12 = scalar_select 0, %s11, %s9
  $region1: #{tpu_custom_call.1} parent=0
    #allocation2 [shape = 'u8[512]{0}', space=vmem, size = 0x400, scoped, tag = 'input window, operand 3, single buffered']
    #allocation3 [shape = 's32[2]{0}', space=sflag, size = 0x8, scoped, tag = 'scoped memory for tpu_custom_call.1']
    #allocation4 [shape = 's32[2]{0}', space=sflag, size = 0x8, scoped, tag = 'scoped memory for tpu_custom_call.1']
    #allocation5 [shape = 'u8[8192]{0}', space=vmem, size = 0x2000, scoped, tag = 'output window, operand 0']
    %13 = vsyncpa [#allocation3], 0
    %14 = vsyncpa [#allocation4], 0
    %s15 = scalar_lea.sflag [#allocation4], 1
    %16 = vsyncpa %s15, 0
    loop: start=0, step=1, limit=4
    $region2: #{tpu_custom_call.1} parent=1 // loop_pre_header
      _
    $region3: #{tpu_custom_call.1} parent=1 // loop_header
      %s18 = sphi 0, %s22
      %p19 = scmp.ge.s32.totalorder %s18, 4
      %s28 = sphi 0, %s30
      %s31 = sphi 0, %s28
      %s32 = sphi 0, %s31
      %s48 = sphi 0, %s32
      %s54 = sphi 0, %s56
      %s57 = sphi 0, %s54
      %s58 = sphi 0, %s57
      %s74 = sphi 0, %s58
      %s78 = sphi 0, %s78
      %s80 = sphi 0, %s78
      %s81 = sphi 0, %s80
      %s95 = sphi 0, %s81
      %s99 = sphi 0, %s99
      %s101 = sphi 0, %s99
      %s102 = sphi 0, %s101
      %s116 = sphi 0, %s102
      %s120 = sphi 0, %s120
      %s122 = sphi 0, %s120
      %s123 = sphi 0, %s122
      %s137 = sphi 0, %s123
      %s141 = sphi 0, %s141
      %s143 = sphi 0, %s141
      %s144 = sphi 0, %s143
      %s158 = sphi 0, %s144
      %s162 = sphi 0, %s162
      %s164 = sphi 0, %s162
      %s165 = sphi 0, %s164
      %s179 = sphi 0, %s165
      %s183 = sphi 0, %s183
      %s185 = sphi 0, %s183
      %s186 = sphi 0, %s185
      %s200 = sphi 0, %s186
      %s206 = sphi 0, %s208
      %s209 = sphi 0, %s206
      %s210 = sphi 0, %s209
      %s226 = sphi 0, %s210
    $region4: #{tpu_custom_call.1} parent=1 // loop_header_branch
      %21 = sbr.rel (%p19) target = $region8
    $region5: #{tpu_custom_call.1} parent=1 // loop_body
      %s23 = ssub.s32 %s18, 1
      %s24 = ssub.s32 %s18, 2
      %s25 = sadd.s32 %s18, 1
      %s26 = ssub.s32 %s18, %s25
      %p27 = scmp.eq.s32.totalorder %s26, 0
      %s29 = sadd.s32 %s28, 1
      %s30 = scalar_select %p27, %s28, %s29
      %p33 = pneg %p27
      %p34 = scmp.eq.s32.totalorder %s18, 1
      %p35 = por %p33, %p34
      %p36 = scmp.ne.s32.totalorder %s28, %s31
      %p37 = scmp.eq.s32.totalorder %s18, 0
      %p38 = por %p36, %p37
      %p39 = scmp.ne.s32.totalorder %s28, %s31
      %p40 = scmp.eq.s32.totalorder %s23, 1
      %p41 = por %p39, %p40
      %p42 = scmp.ne.s32.totalorder %s31, %s32
      %p43 = scmp.eq.s32.totalorder %s23, 0
      %p44 = por %p42, %p43
      %p45 = scmp.ne.s32.totalorder %s31, %s32
      %p46 = scmp.eq.s32.totalorder %s24, 1
      %p47 = por %p45, %p46
      %p49 = scmp.ne.s32.totalorder %s32, %s48
      %p50 = scmp.eq.s32.totalorder %s24, 0
      %p51 = por %p49, %p50
      %s52 = ssub.s32 %s18, %s25
      %p53 = scmp.eq.s32.totalorder %s52, 0
      %s55 = sadd.s32 %s54, 1
      %s56 = scalar_select %p53, %s54, %s55
      %p59 = pneg %p53
      %p60 = scmp.eq.s32.totalorder %s18, 1
      %p61 = por %p59, %p60
      %p62 = scmp.ne.s32.totalorder %s54, %s57
      %p63 = scmp.eq.s32.totalorder %s18, 0
      %p64 = por %p62, %p63
      %p65 = scmp.ne.s32.totalorder %s54, %s57
      %p66 = scmp.eq.s32.totalorder %s23, 1
      %p67 = por %p65, %p66
      %p68 = scmp.ne.s32.totalorder %s57, %s58
      %p69 = scmp.eq.s32.totalorder %s23, 0
      %p70 = por %p68, %p69
      %p71 = scmp.ne.s32.totalorder %s57, %s58
      %p72 = scmp.eq.s32.totalorder %s24, 1
      %p73 = por %p71, %p72
      %p75 = scmp.ne.s32.totalorder %s58, %s74
      %p76 = scmp.eq.s32.totalorder %s24, 0
      %p77 = por %p75, %p76
      %s79 = sadd.s32 %s78, 1
      %p82 = scmp.eq.s32.totalorder %s18, 1
      %p83 = scmp.ne.s32.totalorder %s78, %s80
      %p84 = scmp.eq.s32.totalorder %s18, 0
      %p85 = por %p83, %p84
      %p86 = scmp.ne.s32.totalorder %s78, %s80
      %p87 = scmp.eq.s32.totalorder %s23, 1
      %p88 = por %p86, %p87
      %p89 = scmp.ne.s32.totalorder %s80, %s81
      %p90 = scmp.eq.s32.totalorder %s23, 0
      %p91 = por %p89, %p90
      %p92 = scmp.ne.s32.totalorder %s80, %s81
      %p93 = scmp.eq.s32.totalorder %s24, 1
      %p94 = por %p92, %p93
      %p96 = scmp.ne.s32.totalorder %s81, %s95
      %p97 = scmp.eq.s32.totalorder %s24, 0
      %p98 = por %p96, %p97
      %s100 = sadd.s32 %s99, 1
      %p103 = scmp.eq.s32.totalorder %s18, 1
      %p104 = scmp.ne.s32.totalorder %s99, %s101
      %p105 = scmp.eq.s32.totalorder %s18, 0
      %p106 = por %p104, %p105
      %p107 = scmp.ne.s32.totalorder %s99, %s101
      %p108 = scmp.eq.s32.totalorder %s23, 1
      %p109 = por %p107, %p108
      %p110 = scmp.ne.s32.totalorder %s101, %s102
      %p111 = scmp.eq.s32.totalorder %s23, 0
      %p112 = por %p110, %p111
      %p113 = scmp.ne.s32.totalorder %s101, %s102
      %p114 = scmp.eq.s32.totalorder %s24, 1
      %p115 = por %p113, %p114
      %p117 = scmp.ne.s32.totalorder %s102, %s116
      %p118 = scmp.eq.s32.totalorder %s24, 0
      %p119 = por %p117, %p118
      %s121 = sadd.s32 %s120, 1
      %p124 = scmp.eq.s32.totalorder %s18, 1
      %p125 = scmp.ne.s32.totalorder %s120, %s122
      %p126 = scmp.eq.s32.totalorder %s18, 0
      %p127 = por %p125, %p126
      %p128 = scmp.ne.s32.totalorder %s120, %s122
      %p129 = scmp.eq.s32.totalorder %s23, 1
      %p130 = por %p128, %p129
      %p131 = scmp.ne.s32.totalorder %s122, %s123
      %p132 = scmp.eq.s32.totalorder %s23, 0
      %p133 = por %p131, %p132
      %p134 = scmp.ne.s32.totalorder %s122, %s123
      %p135 = scmp.eq.s32.totalorder %s24, 1
      %p136 = por %p134, %p135
      %p138 = scmp.ne.s32.totalorder %s123, %s137
      %p139 = scmp.eq.s32.totalorder %s24, 0
      %p140 = por %p138, %p139
      %s142 = sadd.s32 %s141, 1
      %p145 = scmp.eq.s32.totalorder %s18, 1
      %p146 = scmp.ne.s32.totalorder %s141, %s143
      %p147 = scmp.eq.s32.totalorder %s18, 0
      %p148 = por %p146, %p147
      %p149 = scmp.ne.s32.totalorder %s141, %s143
      %p150 = scmp.eq.s32.totalorder %s23, 1
      %p151 = por %p149, %p150
      %p152 = scmp.ne.s32.totalorder %s143, %s144
      %p153 = scmp.eq.s32.totalorder %s23, 0
      %p154 = por %p152, %p153
      %p155 = scmp.ne.s32.totalorder %s143, %s144
      %p156 = scmp.eq.s32.totalorder %s24, 1
      %p157 = por %p155, %p156
      %p159 = scmp.ne.s32.totalorder %s144, %s158
      %p160 = scmp.eq.s32.totalorder %s24, 0
      %p161 = por %p159, %p160
      %s163 = sadd.s32 %s162, 1
      %p166 = scmp.eq.s32.totalorder %s18, 1
      %p167 = scmp.ne.s32.totalorder %s162, %s164
      %p168 = scmp.eq.s32.totalorder %s18, 0
      %p169 = por %p167, %p168
      %p170 = scmp.ne.s32.totalorder %s162, %s164
      %p171 = scmp.eq.s32.totalorder %s23, 1
      %p172 = por %p170, %p171
      %p173 = scmp.ne.s32.totalorder %s164, %s165
      %p174 = scmp.eq.s32.totalorder %s23, 0
      %p175 = por %p173, %p174
      %p176 = scmp.ne.s32.totalorder %s164, %s165
      %p177 = scmp.eq.s32.totalorder %s24, 1
      %p178 = por %p176, %p177
      %p180 = scmp.ne.s32.totalorder %s165, %s179
      %p181 = scmp.eq.s32.totalorder %s24, 0
      %p182 = por %p180, %p181
      %s184 = sadd.s32 %s183, 1
      %p187 = scmp.eq.s32.totalorder %s18, 1
      %p188 = scmp.ne.s32.totalorder %s183, %s185
      %p189 = scmp.eq.s32.totalorder %s18, 0
      %p190 = por %p188, %p189
      %p191 = scmp.ne.s32.totalorder %s183, %s185
      %p192 = scmp.eq.s32.totalorder %s23, 1
      %p193 = por %p191, %p192
      %p194 = scmp.ne.s32.totalorder %s185, %s186
      %p195 = scmp.eq.s32.totalorder %s23, 0
      %p196 = por %p194, %p195
      %p197 = scmp.ne.s32.totalorder %s185, %s186
      %p198 = scmp.eq.s32.totalorder %s24, 1
      %p199 = por %p197, %p198
      %p201 = scmp.ne.s32.totalorder %s186, %s200
      %p202 = scmp.eq.s32.totalorder %s24, 0
      %p203 = por %p201, %p202
      %s204 = ssub.s32 %s18, %s25
      %p205 = scmp.eq.s32.totalorder %s204, 0
      %s207 = sadd.s32 %s206, 1
      %s208 = scalar_select %p205, %s206, %s207
      %p211 = pneg %p205
      %p212 = scmp.eq.s32.totalorder %s18, 1
      %p213 = por %p211, %p212
      %p214 = scmp.ne.s32.totalorder %s206, %s209
      %p215 = scmp.eq.s32.totalorder %s18, 0
      %p216 = por %p214, %p215
      %p217 = scmp.ne.s32.totalorder %s206, %s209
      %p218 = scmp.eq.s32.totalorder %s23, 1
      %p219 = por %p217, %p218
      %p220 = scmp.ne.s32.totalorder %s209, %s210
      %p221 = scmp.eq.s32.totalorder %s23, 0
      %p222 = por %p220, %p221
      %p223 = scmp.ne.s32.totalorder %s209, %s210
      %p224 = scmp.eq.s32.totalorder %s24, 1
      %p225 = por %p223, %p224
      %p227 = scmp.ne.s32.totalorder %s210, %s226
      %p228 = scmp.eq.s32.totalorder %s24, 0
      %p229 = por %p227, %p228
      %p230 = scmp.le.s32.totalorder 1, %s18
      %p231 = scmp.lt.s32.totalorder %s18, 3
      %p232 = pnand %p230, %p231
      %p233 = pneg %p232
      // Predicated region
      $region9: #{tpu_custom_call.1} parent=5 // pred_check
        _
      $region10: #{tpu_custom_call.1} parent=5 // pred_check_branch
        %235 = sbr.rel (%p232) target = $region12
      $region11: #{tpu_custom_call.1} parent=5 // pred_region
        %s236 = ssub.s32 %s18, 1
        // Predicated region
        $region13: #{tpu_custom_call.1} parent=11 // pred_check
          %p237 = pneg %p91
        $region14: #{tpu_custom_call.1} parent=11 // pred_check_branch
          %239 = sbr.rel (%p237) target = $region16
        $region15: #{tpu_custom_call.1} parent=11 // pred_region
          _
        $region16: #{tpu_custom_call.1} parent=11 // pred_fallthru
          _
        // Predicated region
        $region17: #{tpu_custom_call.1} parent=11 // pred_check
          %p240 = pneg %p112
        $region18: #{tpu_custom_call.1} parent=11 // pred_check_branch
          %242 = sbr.rel (%p240) target = $region20
        $region19: #{tpu_custom_call.1} parent=11 // pred_region
          %s244 = ssub.s32 16, 16
          %245 = vsyncadd [#allocation3], %s244
          %s247 = sshll.u32 [#allocation2], 4
          %s248 = int_to_ptr.vmem [resolvable:$true] %s247
          %250 = dma.hbm_to_vmem [thread:$0]  %s3, 16, %s248, [#allocation3]
        $region20: #{tpu_custom_call.1} parent=11 // pred_fallthru
          _
        // Predicated region
        $region21: #{tpu_custom_call.1} parent=11 // pred_check
          %p251 = pneg %p133
        $region22: #{tpu_custom_call.1} parent=11 // pred_check_branch
          %253 = sbr.rel (%p251) target = $region24
        $region23: #{tpu_custom_call.1} parent=11 // pred_region
          _
        $region24: #{tpu_custom_call.1} parent=11 // pred_fallthru
          _
        // Predicated region
        $region25: #{tpu_custom_call.1} parent=11 // pred_check
          %p254 = pneg %p154
        $region26: #{tpu_custom_call.1} parent=11 // pred_check_branch
          %256 = sbr.rel (%p254) target = $region28
        $region27: #{tpu_custom_call.1} parent=11 // pred_region
          _
        $region28: #{tpu_custom_call.1} parent=11 // pred_fallthru
          _
        // Predicated region
        $region29: #{tpu_custom_call.1} parent=11 // pred_check
          %p257 = pneg %p175
        $region30: #{tpu_custom_call.1} parent=11 // pred_check_branch
          %259 = sbr.rel (%p257) target = $region32
        $region31: #{tpu_custom_call.1} parent=11 // pred_region
          _
        $region32: #{tpu_custom_call.1} parent=11 // pred_fallthru
          _
        // Predicated region
        $region33: #{tpu_custom_call.1} parent=11 // pred_check
          %p260 = pneg %p196
        $region34: #{tpu_custom_call.1} parent=11 // pred_check_branch
          %262 = sbr.rel (%p260) target = $region36
        $region35: #{tpu_custom_call.1} parent=11 // pred_region
          _
        $region36: #{tpu_custom_call.1} parent=11 // pred_fallthru
          _
      $region12: #{tpu_custom_call.1} parent=5 // pred_fallthru
        _
      %p263 = scmp.lt.s32.totalorder %s18, 2
      // Predicated region
      $region37: #{tpu_custom_call.1} parent=5 // pred_check
        %p264 = pneg %p263
      $region38: #{tpu_custom_call.1} parent=5 // pred_check_branch
        %266 = sbr.rel (%p264) target = $region40
      $region39: #{tpu_custom_call.1} parent=5 // pred_region
        // Predicated region
        $region41: #{tpu_custom_call.1} parent=39 // pred_check
          %p267 = pneg %p38
        $region42: #{tpu_custom_call.1} parent=39 // pred_check_branch
          %269 = sbr.rel (%p267) target = $region44
        $region43: #{tpu_custom_call.1} parent=39 // pred_region
          %p270 = scmp.lt.s32.totalorder %s18, 1
          %s271 = scalar_select %p270, %s18, 1
          %s272 = smul.addr %s271, 8
          %s273 = scalar_lea.vmem %s0, %s272
        $region44: #{tpu_custom_call.1} parent=39 // pred_fallthru
          _
        // Predicated region
        $region45: #{tpu_custom_call.1} parent=39 // pred_check
          %p274 = pneg %p64
        $region46: #{tpu_custom_call.1} parent=39 // pred_check_branch
          %276 = sbr.rel (%p274) target = $region48
        $region47: #{tpu_custom_call.1} parent=39 // pred_region
          %p277 = scmp.lt.s32.totalorder %s18, 1
          %s278 = scalar_select %p277, %s18, 1
          %s279 = smul.addr %s278, 8
          %s280 = scalar_lea.vmem %s1, %s279
        $region48: #{tpu_custom_call.1} parent=39 // pred_fallthru
          _
      $region40: #{tpu_custom_call.1} parent=5 // pred_fallthru
        _
      %p281 = scmp.le.s32.totalorder 1, %s18
      %p282 = scmp.lt.s32.totalorder %s18, 3
      %p283 = pnand %p281, %p282
      %p284 = pneg %p283
      // Predicated region
      $region49: #{tpu_custom_call.1} parent=5 // pred_check
        _
      $region50: #{tpu_custom_call.1} parent=5 // pred_check_branch
        %286 = sbr.rel (%p283) target = $region52
      $region51: #{tpu_custom_call.1} parent=5 // pred_region
        %s287 = ssub.s32 %s18, 1
        // Predicated region
        $region53: #{tpu_custom_call.1} parent=51 // pred_check
          %p288 = pneg %p112
        $region54: #{tpu_custom_call.1} parent=51 // pred_check_branch
          %290 = sbr.rel (%p288) target = $region56
        $region55: #{tpu_custom_call.1} parent=51 // pred_region
          %291 = dma.done [#allocation3], 16
        $region56: #{tpu_custom_call.1} parent=51 // pred_fallthru
          _
        %p292 = scmp.lt.s32.totalorder %s23, 1
        %s293 = scalar_select %p292, %s23, 1
        %s294 = smul.addr %s293, 8
        %s295 = scalar_lea.vmem %s0, %s294
        %p296 = pneg %p44
        %p297 = pneg %p41
        %p298 = scmp.lt.s32.totalorder %s23, 1
        %s299 = scalar_select %p298, %s23, 1
        %s300 = smul.addr %s299, 8
        %s301 = scalar_lea.vmem %s1, %s300
        %p302 = pneg %p70
        %p303 = pneg %p67
        %p304 = pneg %p91
        %p305 = pneg %p88
        %p306 = pneg %p112
        %p307 = pneg %p109
        %p308 = pneg %p133
        %p309 = pneg %p130
        %p310 = pneg %p154
        %p311 = pneg %p151
        %p312 = pneg %p175
        %p313 = pneg %p172
        %p314 = pneg %p196
        %p315 = pneg %p193
        %p316 = pneg %p222
        %p317 = pneg %p219
        %s318 = sand.u32 %s209, 1
        %s319 = scalar_lea.sflag [#allocation4], %s318
        %s320 = sand.u32 %s209, 1
        %s321 = smul.addr %s320, 8
        %s322 = scalar_lea.vmem [#allocation5], %s321
        %p323 = scmp.lt.s32.totalorder %s23, 1
        %s324 = scalar_select %p323, %s23, 1
        %s325 = smul.addr %s324, 8
        %s326 = scalar_lea.vmem %s0, %s325
        %p327 = scmp.lt.s32.totalorder %s23, 1
        %s328 = scalar_select %p327, %s23, 1
        %s329 = smul.addr %s328, 8
        %s330 = scalar_lea.vmem %s1, %s329
        %v331 = vld [vmem:[%s326] sm:$0xff]
        %v332 = vld [vmem:[%s2] sm:$0xff]
        %v333 = vld [vmem:[%s2 + $0x8] sm:$0xff]
        %v334 = vld [vmem:[#allocation2] sm:$0x1]
        %v336 = vlaneseq
        %v337 = vshrl.u32 %v336, 7
        %v338 = vsub.s32 0, %v337
        %v339 = vrot.slane %v334, %v338
        %vm341 = vcmask 130048
        %v343 = vsel %vm341, %v331, 0
        %345 = vmatprep.subr.mxu0 0.0
        %346 = vmatpush1.msra.mxu0 %v332
        %347 = vmatprep.subr.mxu0 0.0
        %348 = vmatpush1.msra.mxu0 %v333
        %349 = vmatprep.subr.mxu0 0.0
        %350 = vmatpush1.msra.mxu0 0.0
        %351 = vmatprep.subr.mxu0 0.0
        %352 = vmatpush1.msra.mxu0 0.0
        %353 = vmatprep.subr.mxu0 0.0
        %354 = vmatpush1.msra.mxu0 0.0
        %355 = vmatprep.subr.mxu0 0.0
        %356 = vmatpush1.msra.mxu0 0.0
        %357 = vmatprep.subr.mxu0 0.0
        %358 = vmatpush1.msra.mxu0 0.0
        %359 = vmatprep.subr.mxu0 0.0
        %360 = vmatpush1.msra.mxu0 0.0
        %361 = vmatprep.subr.mxu0 0.0
        %362 = vmatpush1.msra.mxu0 0.0
        %363 = vmatprep.subr.mxu0 0.0
        %364 = vmatpush1.msra.mxu0 0.0
        %365 = vmatprep.subr.mxu0 0.0
        %366 = vmatpush1.msra.mxu0 0.0
        %367 = vmatprep.subr.mxu0 0.0
        %368 = vmatpush1.msra.mxu0 0.0
        %369 = vmatprep.subr.mxu0 0.0
        %370 = vmatpush1.msra.mxu0 0.0
        %371 = vmatprep.subr.mxu0 0.0
        %372 = vmatpush1.msra.mxu0 0.0
        %373 = vmatprep.subr.mxu0 0.0
        %374 = vmatpush1.msra.mxu0 0.0
        %375 = vmatprep.subr.mxu0 0.0
        %376 = vmatpush1.msra.mxu0 0.0
        %377 = vmatprep.subr.mxu0 0.0
        %378 = vmatpush1.msra.mxu0 0.0
        %379 = vmatprep.subr.mxu0 0.0
        %380 = vmatpush1.msra.mxu0 0.0
        %381 = vmatprep.subr.mxu0 0.0
        %382 = vmatpush1.msra.mxu0 0.0
        %383 = vmatprep.subr.mxu0 0.0
        %384 = vmatpush1.msra.mxu0 0.0
        %385 = vmatprep.subr.mxu0 0.0
        %386 = vmatpush1.msra.mxu0 0.0
        %387 = vmatprep.subr.mxu0 0.0
        %388 = vmatpush1.msra.mxu0 0.0
        %389 = vmatprep.subr.mxu0 0.0
        %390 = vmatpush1.msra.mxu0 0.0
        %391 = vmatprep.subr.mxu0 0.0
        %392 = vmatpush1.msra.mxu0 0.0
        %393 = vmatprep.subr.mxu0 0.0
        %394 = vmatpush1.msra.mxu0 0.0
        %395 = vmatprep.subr.mxu0 0.0
        %396 = vmatpush1.msra.mxu0 0.0
        %397 = vmatprep.subr.mxu0 0.0
        %398 = vmatpush1.msra.mxu0 0.0
        %399 = vmatprep.subr.mxu0 0.0
        %400 = vmatpush1.msra.mxu0 0.0
        %401 = vmatprep.subr.mxu0 0.0
        %402 = vmatpush1.msra.mxu0 0.0
        %403 = vmatprep.subr.mxu0 0.0
        %404 = vmatpush1.msra.mxu0 0.0
        %405 = vmatprep.subr.mxu0 0.0
        %406 = vmatpush1.msra.mxu0 0.0
        %407 = vmatprep.subr.mxu0 0.0
        %408 = vmatpush1.msra.mxu0 0.0
        %409 = vmatprep.mubr.f32.mxu0 0.0
        %410 = vmatmul.mubr.f32.gmra.mrb[0].mxu0 %v343
        %v411 = vpop.f32.mrb[0].mxu0
        %v412 = vadd.f32 %v339, %v411
        %v413 = vpop.f32.mrb[0].mxu0
        %414 = vdwg.mxu0
        %v415 = vmul.f32 %v412, %v412
        %v416 = vmul.f32 %v412, %v415
        %v417 = vmul.f32 %v416, 0.044715
        %v418 = vadd.f32 %v412, %v417
        %v419 = vmul.f32 %v418, 0.7978846
        %v420 = vtanh.pop %v419
        %v421 = vadd.f32 %v420, 1.0
        %v422 = vmul.f32 %v421, 0.5
        %v423 = vmul.f32 %v412, %v422
        %v424 = vld [vmem:[%s4] sm:$0xff]
        %v425 = vld [vmem:[%s4 + $0x8] sm:$0xff]
        %v426 = vld [vmem:[%s4 + $0x10] sm:$0xff]
        %v427 = vld [vmem:[%s4 + $0x18] sm:$0xff]
        %v428 = vld [vmem:[%s5] sm:$0x1]
        %v430 = vlaneseq
        %v431 = vshrl.u32 %v430, 7
        %v432 = vsub.s32 0, %v431
        %v433 = vrot.slane %v428, %v432
        %vm435 = vcmask 261120
        %v437 = vsel %vm435, %v423, 0
        %439 = vmatprep.subr.mxu0 0.0
        %440 = vmatpush1.msra.mxu0 %v424
        %441 = vmatprep.subr.mxu0 0.0
        %442 = vmatpush1.msra.mxu0 %v425
        %443 = vmatprep.subr.mxu0 0.0
        %444 = vmatpush1.msra.mxu0 %v426
        %445 = vmatprep.subr.mxu0 0.0
        %446 = vmatpush1.msra.mxu0 %v427
        %447 = vmatprep.subr.mxu0 0.0
        %448 = vmatpush1.msra.mxu0 0.0
        %449 = vmatprep.subr.mxu0 0.0
        %450 = vmatpush1.msra.mxu0 0.0
        %451 = vmatprep.subr.mxu0 0.0
        %452 = vmatpush1.msra.mxu0 0.0
        %453 = vmatprep.subr.mxu0 0.0
        %454 = vmatpush1.msra.mxu0 0.0
        %455 = vmatprep.subr.mxu0 0.0
        %456 = vmatpush1.msra.mxu0 0.0
        %457 = vmatprep.subr.mxu0 0.0
        %458 = vmatpush1.msra.mxu0 0.0
        %459 = vmatprep.subr.mxu0 0.0
        %460 = vmatpush1.msra.mxu0 0.0
        %461 = vmatprep.subr.mxu0 0.0
        %462 = vmatpush1.msra.mxu0 0.0
        %463 = vmatprep.subr.mxu0 0.0
        %464 = vmatpush1.msra.mxu0 0.0
        %465 = vmatprep.subr.mxu0 0.0
        %466 = vmatpush1.msra.mxu0 0.0
        %467 = vmatprep.subr.mxu0 0.0
        %468 = vmatpush1.msra.mxu0 0.0
        %469 = vmatprep.subr.mxu0 0.0
        %470 = vmatpush1.msra.mxu0 0.0
        %471 = vmatprep.subr.mxu0 0.0
        %472 = vmatpush1.msra.mxu0 0.0
        %473 = vmatprep.subr.mxu0 0.0
        %474 = vmatpush1.msra.mxu0 0.0
        %475 = vmatprep.subr.mxu0 0.0
        %476 = vmatpush1.msra.mxu0 0.0
        %477 = vmatprep.subr.mxu0 0.0
        %478 = vmatpush1.msra.mxu0 0.0
        %479 = vmatprep.subr.mxu0 0.0
        %480 = vmatpush1.msra.mxu0 0.0
        %481 = vmatprep.subr.mxu0 0.0
        %482 = vmatpush1.msra.mxu0 0.0
        %483 = vmatprep.subr.mxu0 0.0
        %484 = vmatpush1.msra.mxu0 0.0
        %485 = vmatprep.subr.mxu0 0.0
        %486 = vmatpush1.msra.mxu0 0.0
        %487 = vmatprep.subr.mxu0 0.0
        %488 = vmatpush1.msra.mxu0 0.0
        %489 = vmatprep.subr.mxu0 0.0
        %490 = vmatpush1.msra.mxu0 0.0
        %491 = vmatprep.subr.mxu0 0.0
        %492 = vmatpush1.msra.mxu0 0.0
        %493 = vmatprep.subr.mxu0 0.0
        %494 = vmatpush1.msra.mxu0 0.0
        %495 = vmatprep.subr.mxu0 0.0
        %496 = vmatpush1.msra.mxu0 0.0
        %497 = vmatprep.subr.mxu0 0.0
        %498 = vmatpush1.msra.mxu0 0.0
        %499 = vmatprep.subr.mxu0 0.0
        %500 = vmatpush1.msra.mxu0 0.0
        %501 = vmatprep.subr.mxu0 0.0
        %502 = vmatpush1.msra.mxu0 0.0
        %503 = vmatprep.mubr.f32.mxu0 0.0
        %504 = vmatmul.mubr.f32.gmra.mrb[0].mxu0 %v437
        %v505 = vpop.f32.mrb[0].mxu0
        %v506 = vadd.f32 %v433, %v505
        %v507 = vpop.f32.mrb[0].mxu0
        %508 = vdwg.mxu0
        %v509 = vmul.f32 %v506, %v506
        %v510 = vmul.f32 %v506, %v509
        %v511 = vmul.f32 %v510, 0.044715
        %v512 = vadd.f32 %v506, %v511
        %v513 = vmul.f32 %v512, 0.7978846
        %v514 = vtanh.pop %v513
        %v515 = vadd.f32 %v514, 1.0
        %v516 = vmul.f32 %v515, 0.5
        %v517 = vmul.f32 %v506, %v516
        %v518 = vld [vmem:[%s6] sm:$0xff]
        %v519 = vld [vmem:[%s6 + $0x8] sm:$0xff]
        %v520 = vld [vmem:[%s6 + $0x10] sm:$0xff]
        %v521 = vld [vmem:[%s6 + $0x18] sm:$0xff]
        %v522 = vld [vmem:[%s7] sm:$0x1]
        %v524 = vlaneseq
        %v525 = vshrl.u32 %v524, 7
        %v526 = vsub.s32 0, %v525
        %v527 = vrot.slane %v522, %v526
        %v530 = vsel %vm435, %v517, 0
        %532 = vmatprep.subr.mxu0 0.0
        %533 = vmatpush1.msra.mxu0 %v518
        %534 = vmatprep.subr.mxu0 0.0
        %535 = vmatpush1.msra.mxu0 %v519
        %536 = vmatprep.subr.mxu0 0.0
        %537 = vmatpush1.msra.mxu0 %v520
        %538 = vmatprep.subr.mxu0 0.0
        %539 = vmatpush1.msra.mxu0 %v521
        %540 = vmatprep.subr.mxu0 0.0
        %541 = vmatpush1.msra.mxu0 0.0
        %542 = vmatprep.subr.mxu0 0.0
        %543 = vmatpush1.msra.mxu0 0.0
        %544 = vmatprep.subr.mxu0 0.0
        %545 = vmatpush1.msra.mxu0 0.0
        %546 = vmatprep.subr.mxu0 0.0
        %547 = vmatpush1.msra.mxu0 0.0
        %548 = vmatprep.subr.mxu0 0.0
        %549 = vmatpush1.msra.mxu0 0.0
        %550 = vmatprep.subr.mxu0 0.0
        %551 = vmatpush1.msra.mxu0 0.0
        %552 = vmatprep.subr.mxu0 0.0
        %553 = vmatpush1.msra.mxu0 0.0
        %554 = vmatprep.subr.mxu0 0.0
        %555 = vmatpush1.msra.mxu0 0.0
        %556 = vmatprep.subr.mxu0 0.0
        %557 = vmatpush1.msra.mxu0 0.0
        %558 = vmatprep.subr.mxu0 0.0
        %559 = vmatpush1.msra.mxu0 0.0
        %560 = vmatprep.subr.mxu0 0.0
        %561 = vmatpush1.msra.mxu0 0.0
        %562 = vmatprep.subr.mxu0 0.0
        %563 = vmatpush1.msra.mxu0 0.0
        %564 = vmatprep.subr.mxu0 0.0
        %565 = vmatpush1.msra.mxu0 0.0
        %566 = vmatprep.subr.mxu0 0.0
        %567 = vmatpush1.msra.mxu0 0.0
        %568 = vmatprep.subr.mxu0 0.0
        %569 = vmatpush1.msra.mxu0 0.0
        %570 = vmatprep.subr.mxu0 0.0
        %571 = vmatpush1.msra.mxu0 0.0
        %572 = vmatprep.subr.mxu0 0.0
        %573 = vmatpush1.msra.mxu0 0.0
        %574 = vmatprep.subr.mxu0 0.0
        %575 = vmatpush1.msra.mxu0 0.0
        %576 = vmatprep.subr.mxu0 0.0
        %577 = vmatpush1.msra.mxu0 0.0
        %578 = vmatprep.subr.mxu0 0.0
        %579 = vmatpush1.msra.mxu0 0.0
        %580 = vmatprep.subr.mxu0 0.0
        %581 = vmatpush1.msra.mxu0 0.0
        %582 = vmatprep.subr.mxu0 0.0
        %583 = vmatpush1.msra.mxu0 0.0
        %584 = vmatprep.subr.mxu0 0.0
        %585 = vmatpush1.msra.mxu0 0.0
        %586 = vmatprep.subr.mxu0 0.0
        %587 = vmatpush1.msra.mxu0 0.0
        %588 = vmatprep.subr.mxu0 0.0
        %589 = vmatpush1.msra.mxu0 0.0
        %590 = vmatprep.subr.mxu0 0.0
        %591 = vmatpush1.msra.mxu0 0.0
        %592 = vmatprep.subr.mxu0 0.0
        %593 = vmatpush1.msra.mxu0 0.0
        %594 = vmatprep.subr.mxu0 0.0
        %595 = vmatpush1.msra.mxu0 0.0
        %596 = vmatprep.mubr.f32.mxu0 0.0
        %597 = vmatmul.mubr.f32.gmra.mrb[0].mxu0 %v530
        %v598 = vpop.f32.mrb[0].mxu0
        %v599 = vadd.f32 %v527, %v598
        %v600 = vpop.f32.mrb[0].mxu0
        %601 = vdwg.mxu0
        %v602 = vld [vmem:[%s330] sm:$0xff]
        %604 = vset.pattern.permute.xlu0 0
        %605 = vperm.xlu0 %604, %v602
        %v606 = vpop.permute.xlu0 %605
        %v608 = vmul.f32 %v599, %v606
        %609 = vst.msk [vmem:[%s322] sm:$0xff] %vm341, %v608
        %s610 = sand.u32 %s209, 1
        %s611 = scalar_lea.sflag [#allocation4], %s610
        %s612 = sand.u32 %s209, 1
        %s613 = smul.addr %s612, 8
        %s614 = scalar_lea.vmem [#allocation5], %s613
        // Predicated region
        $region57: #{tpu_custom_call.1} parent=51 // pred_check
          %p615 = pneg %p219
        $region58: #{tpu_custom_call.1} parent=51 // pred_check_branch
          %617 = sbr.rel (%p615) target = $region60
        $region59: #{tpu_custom_call.1} parent=51 // pred_region
          %s619 = ssub.s32 128, 128
          %620 = vsyncadd %s611, %s619
          %s621 = smul.addr %s23, 128
          %s622 = scalar_lea.hbm %s8, %s621
          %s624 = sshll.u32 %s614, 4
          %s625 = int_to_ptr.vmem [resolvable:$true] %s624
          %627 = dma.vmem_to_hbm [thread:$0]  %s625, 128, %s622, %s611
        $region60: #{tpu_custom_call.1} parent=51 // pred_fallthru
          _
      $region52: #{tpu_custom_call.1} parent=5 // pred_fallthru
        _
      %p628 = scmp.le.s32.totalorder 2, %s18
      // Predicated region
      $region61: #{tpu_custom_call.1} parent=5 // pred_check
        %p629 = pneg %p628
      $region62: #{tpu_custom_call.1} parent=5 // pred_check_branch
        %631 = sbr.rel (%p629) target = $region64
      $region63: #{tpu_custom_call.1} parent=5 // pred_region
        %s632 = ssub.s32 %s18, 2
        // Predicated region
        $region65: #{tpu_custom_call.1} parent=63 // pred_check
          %p633 = pneg %p225
        $region66: #{tpu_custom_call.1} parent=63 // pred_check_branch
          %635 = sbr.rel (%p633) target = $region68
        $region67: #{tpu_custom_call.1} parent=63 // pred_region
          %s636 = sand.u32 %s210, 1
          %s637 = scalar_lea.sflag [#allocation4], %s636
          %s638 = sand.u32 %s210, 1
          %s639 = smul.addr %s638, 8
          %s640 = scalar_lea.vmem [#allocation5], %s639
          %641 = dma.done %s637, 128
        $region68: #{tpu_custom_call.1} parent=63 // pred_fallthru
          _
      $region64: #{tpu_custom_call.1} parent=5 // pred_fallthru
        _
    $region6: #{tpu_custom_call.1} parent=1 // loop_footer
      %s22 = sadd.s32 1, %s18
    $region7: #{tpu_custom_call.1} parent=1 // loop_footer_branch
      %17 = sbr.rel target = $region3
    $region8: #{tpu_custom_call.1} parent=1 // loop_exit
      _
    %642 = vsyncpa [#allocation3], 1
    %s643 = scalar_lea.sflag [#allocation3], 1
    %644 = vsyncpa %s643, 1
    %645 = vsyncpa [#allocation4], 1
    %s646 = scalar_lea.sflag [#allocation4], 1
    %647 = vsyncpa %s646, 1

</llo_original>
